<compile_context>
chip_gen: v7x
topology: tpu7x:2x2x1
jax: 0.10.0
libtpu: 0.0.40
codegen_flags: <defaults>
</compile_context>

<pallas_src>
import functools

import jax
import jax.numpy as jnp
from jax.experimental import pallas as pl
from jax.experimental.pallas import tpu as pltpu

_LANE = 128
_SUBLANE = 8


def _round_up(n, m):
    return -(-n // m) * m


def _prelu(y, alpha):
    return jnp.where(y >= 0, y, alpha * y)


# ---------------------------------------------------------------------------
# Fused kernel: one grid step == one (batch, time-tile) of the full layer.
# ---------------------------------------------------------------------------
def _dfsmn_layer_kernel(alpha_ref, xmain_ref, xhalo_ref, wmem_ref, bmem_ref,
                        w1_ref, b1_ref, w2_ref, b2_ref, o_ref,
                        *, ksize, dilation, left, tile_len, matmul_dtype):
    a_mem = alpha_ref[0]          # PReLU alpha, memory branch (SMEM scalar)
    a_out = alpha_ref[1]          # PReLU alpha, act0         (SMEM scalar)

    # Conv window of this tile: Lt main rows + the 8-aligned halo rows of the
    # next tile.  Both pieces are sublane-aligned so this is a cheap aligned
    # concat; its live range is bounded by the time tile, not by L.
    xw = jnp.concatenate([xmain_ref[0], xhalo_ref[0, 0]], axis=0)

    # Depthwise Conv1d (groups = C), BatchNorm folded into the taps.
    wm = wmem_ref[...]                                       # (K, CP)
    acc = xw[0:tile_len, :] * wm[0][None, :]
    for k in range(1, ksize):
        off = k * dilation
        acc = acc + xw[off:off + tile_len, :] * wm[k][None, :]

    # Rows [left*dilation, left*dilation + Lt) of the window == original input.
    residual = xw[left * dilation:left * dilation + tile_len, :]
    mem = _prelu(acc + bmem_ref[...], a_mem) + residual      # memory branch out

    # fc_trans (1x1 conv -> BN -> ReLU -> Dropout(eval)=id -> 1x1 conv) with
    # BN / bn0 folded into w1 / w2.  Matmul M dim == tile_len fills the MXU;
    # operands optionally bf16, accumulation always f32.
    h = jnp.maximum(
        jnp.dot(mem.astype(matmul_dtype), w1_ref[...],
                preferred_element_type=jnp.float32) + b1_ref[...],
        0.0)
    y = jnp.dot(h.astype(matmul_dtype), w2_ref[...],
                preferred_element_type=jnp.float32) + b2_ref[...]
    o_ref[0] = _prelu(y, a_out) + mem


# ---------------------------------------------------------------------------
# Wrapper: BN folding, lane-dense padding, time tiling, pallas_call
# ---------------------------------------------------------------------------
def _fold_bn(bias, bn):
    gamma, beta, mean, var, eps = bn
    s = gamma / jnp.sqrt(var + eps)
    b = (bias - mean) * s + beta
    return s, b


def _pad_last(a, n):
    pad = [(0, 0)] * (a.ndim - 1) + [(0, n - a.shape[-1])]
    return jnp.pad(a, pad)


def _vmem_limit_bytes(Lt, CP, HP, K, halo_pad, w_itemsize):
    """Heuristic scoped-VMEM budget: double-buffered pipeline blocks + weight
    slabs + in-kernel temporaries, with margin.  Clamped to [32 MiB, 64 MiB]
    so it is valid on v5e/v6e (128 MiB physical) and v7x (64 MiB physical)."""
    acts = 2 * (Lt * CP + halo_pad * CP + Lt * CP) * 4            # in/out blocks x2 buffers
    wgts = 2 * ((K + 2) * CP * 4 + (HP + CP) * 4
                + (CP * HP + HP * CP) * w_itemsize)               # weight/bias blocks x2
    temps = 2 * ((Lt + halo_pad) * CP + 3 * Lt * CP + Lt * HP) * 4
    est = acts + wgts + temps + (4 << 20)
    return int(min(max(est, 32 << 20), 64 << 20))


def dfsmn_layer_bn_pre(x, params, *, left_kernel_size, right_kernel_size,
                       dilation=1, time_tile=256, matmul_dtype=jnp.bfloat16):
    """Eval-mode DfsmnLayerBN_pre forward.  x: (B, C, L), PyTorch Conv1d layout."""
    B, C, L = x.shape
    H = params['fc1_w'].shape[0]
    K = left_kernel_size + right_kernel_size + 1
    lpad = left_kernel_size * dilation
    halo = (K - 1) * dilation                      # == lpad + rpad

    CP = _round_up(max(C, _LANE), _LANE)           # channels padded lane-dense
    HP = _round_up(max(H, _LANE), _LANE)           # hidden   padded lane-dense
    halo_pad = _round_up(max(halo, _SUBLANE), _SUBLANE)

    # Time tile == matmul M dimension.  ~256 rows keeps blocks large enough
    # for the HBM pipeline and fills the MXU; clamp for short sequences and
    # make sure a tile always covers the halo of the next one.
    Lt = min(_round_up(time_tile, _SUBLANE), _round_up(L, _SUBLANE))
    Lt = max(Lt, halo_pad)
    T = pl.cdiv(L, Lt)
    Lfull = T * Lt

    # ---- fold BatchNorm (running stats) into weights / biases (trace time) ----
    s_m, b_m = _fold_bn(params['mem_b'], params['mem_bn'])
    w_mem = params['mem_w'][:, 0, :].T * s_m[None, :]            # (K, C)
    s_1, b_1 = _fold_bn(params['fc1_b'], params['fc_bn'])
    w_1 = params['fc1_w'][:, :, 0].T * s_1[None, :]              # (C, H)
    s_0, b_0 = _fold_bn(params['fc2_b'], params['bn0'])
    w_2 = params['fc2_w'][:, :, 0].T * s_0[None, :]              # (H, C)

    # ---- channels-last, pad channels to 128 lanes and time to whole tiles ----
    # TODO(synk): in a full model keep activations channels-last (B, L, C) and
    # chain DFSMN layers on the padded slab so this transpose/pad and the final
    # slice/transpose (extra HBM passes over a memory-bound layer) disappear.
    x_blc = jnp.transpose(x, (0, 2, 1)).astype(jnp.float32)          # (B, L, C)
    pad_right = (T + 1) * Lt - (L + lpad)                            # >= right pad
    xpad = jnp.pad(x_blc, ((0, 0), (lpad, pad_right), (0, CP - C)))  # (B,(T+1)*Lt,CP)
    x_main = xpad[:, :Lfull, :]                                      # (B, T*Lt, CP)
    # Halo rows of the *next* tile, 8-row aligned:
    #   x_halo[b, t] == xpad[b, (t+1)*Lt : (t+1)*Lt + halo_pad]
    x_halo = xpad[:, Lt:, :].reshape(B, T, Lt, CP)[:, :, :halo_pad, :]

    # Zero-pad weights AFTER BN folding: padded lanes stay exactly zero through
    # the conv, biases, PReLU/ReLU, both matmuls and the residual adds.
    w_mem = _pad_last(w_mem, CP).astype(jnp.float32)                     # (K, CP)
    b_m = _pad_last(b_m.reshape(1, C), CP).astype(jnp.float32)           # (1, CP)
    w_1 = _pad_last(jnp.pad(w_1, ((0, CP - C), (0, 0))), HP).astype(matmul_dtype)  # (CP,HP)
    b_1 = _pad_last(b_1.reshape(1, H), HP).astype(jnp.float32)           # (1, HP)
    w_2 = _pad_last(jnp.pad(w_2, ((0, HP - H), (0, 0))), CP).astype(matmul_dtype)  # (HP,CP)
    b_0 = _pad_last(b_0.reshape(1, C), CP).astype(jnp.float32)           # (1, CP)
    alphas = jnp.stack([params['mem_a'], params['act0_a']]).astype(jnp.float32)    # (2,)

    kernel = functools.partial(
        _dfsmn_layer_kernel, ksize=K, dilation=dilation,
        left=left_kernel_size, tile_len=Lt, matmul_dtype=matmul_dtype)

    out = pl.pallas_call(
        kernel,
        out_shape=jax.ShapeDtypeStruct((B, Lfull, CP), jnp.float32),
        grid=(B, T),
        in_specs=[
            # PReLU alphas: true scalars -> SMEM scalar path, no VMEM tile DMA.
            pl.BlockSpec((2,), lambda b, t: (0,),
                         memory_space=pltpu.MemorySpace.SMEM),
            pl.BlockSpec((1, Lt, CP), lambda b, t: (b, t, 0)),             # main time tile
            pl.BlockSpec((1, 1, halo_pad, CP), lambda b, t: (b, t, 0, 0)),  # next-tile halo
            # Weight / bias blocks: constant index_map -> fetched once and kept
            # resident.  (On v7x with production-sized C/H, additionally
            # single-buffer them via pipeline_mode to save scoped VMEM.)
            pl.BlockSpec((K, CP), lambda b, t: (0, 0)),    # depthwise taps (BN folded)
            pl.BlockSpec((1, CP), lambda b, t: (0, 0)),    # memory fused bias
            pl.BlockSpec((CP, HP), lambda b, t: (0, 0)),   # fc1 weight (BN folded)
            pl.BlockSpec((1, HP), lambda b, t: (0, 0)),    # fc1 fused bias
            pl.BlockSpec((HP, CP), lambda b, t: (0, 0)),   # fc2 weight (bn0 folded)
            pl.BlockSpec((1, CP), lambda b, t: (0, 0)),    # fc2+bn0 fused bias
        ],
        out_specs=pl.BlockSpec((1, Lt, CP), lambda b, t: (b, t, 0)),
        compiler_params=pltpu.CompilerParams(
            # Every (b, t) step is independent -> both axes shard across
            # TensorCores on v7x.
            dimension_semantics=("parallel", "parallel"),
            vmem_limit_bytes=_vmem_limit_bytes(
                Lt, CP, HP, K, halo_pad, jnp.dtype(matmul_dtype).itemsize)),
    )(alphas, x_main, x_halo, w_mem, b_m, w_1, b_1, w_2, b_0)

    return jnp.transpose(out[:, :L, :C], (0, 2, 1))                  # back to (B, C, L)


# ---------------------------------------------------------------------------
# Pure-JAX reference (eval mode, unfused) for correctness checking
# ---------------------------------------------------------------------------
def _reference_forward(x, p, *, left_kernel_size, right_kernel_size, dilation=1):
    def bn(y, bnp):  # y: (B, Cc, L)
        g, beta, mu, var, eps = bnp
        inv = g / jnp.sqrt(var + eps)
        return (y - mu[None, :, None]) * inv[None, :, None] + beta[None, :, None]

    B, C, L = x.shape
    K = left_kernel_size + right_kernel_size + 1
    xpad = jnp.pad(x, ((0, 0), (0, 0),
                       (left_kernel_size * dilation, right_kernel_size * dilation)))
    conv = sum(xpad[:, :, k * dilation:k * dilation + L] * p['mem_w'][None, :, 0, k, None]
               for k in range(K)) + p['mem_b'][None, :, None]
    mem = _prelu(bn(conv, p['mem_bn']), p['mem_a']) + x

    h = jnp.einsum('hc,bcl->bhl', p['fc1_w'][:, :, 0], mem) + p['fc1_b'][None, :, None]
    h = jnp.maximum(bn(h, p['fc_bn']), 0.0)                  # ReLU; Dropout = identity
    y = jnp.einsum('ch,bhl->bcl', p['fc2_w'][:, :, 0], h) + p['fc2_b'][None, :, None]
    return _prelu(bn(y, p['bn0']), p['act0_a']) + mem


# ---------------------------------------------------------------------------
# Deterministic synthetic parameters (shapes follow the module's __init__)
# ---------------------------------------------------------------------------
def init_params(key, *, backbone_memory_size, hidden_size,
                left_kernel_size, right_kernel_size):
    C, H = backbone_memory_size, hidden_size
    K = left_kernel_size + right_kernel_size + 1
    keys = iter(jax.random.split(key, 32))

    def nrm(shape, scl=0.1):
        return scl * jax.random.normal(next(keys), shape, jnp.float32)

    def bn(n):
        gamma = 1.0 + 0.1 * jax.random.normal(next(keys), (n,), jnp.float32)
        beta = 0.1 * jax.random.normal(next(keys), (n,), jnp.float32)
        mean = 0.1 * jax.random.normal(next(keys), (n,), jnp.float32)
        var = jax.random.uniform(next(keys), (n,), jnp.float32, 0.5, 1.5)
        return (gamma, beta, mean, var, 1e-5)

    return dict(
        mem_w=nrm((C, 1, K)), mem_b=nrm((C,)), mem_bn=bn(C), mem_a=jnp.float32(0.25),
        fc1_w=nrm((H, C, 1)), fc1_b=nrm((H,)), fc_bn=bn(H),
        fc2_w=nrm((C, H, 1)), fc2_b=nrm((C,)),
        bn0=bn(C), act0_a=jnp.float32(0.25),
    )


if __name__ == "__main__":
    # TODO(synk): training-mode BatchNorm (batch statistics) and stochastic
    # Dropout are not implemented; this reproduces eval-mode semantics.
    key = jax.random.PRNGKey(0)
    kp, kx, kp2, kx2 = jax.random.split(key, 4)

    # --- case 1: module-sized smoke test (single time tile) -----------------
    cfg = dict(backbone_memory_size=32, hidden_size=32,
               left_kernel_size=2, right_kernel_size=2, dilation=1)
    B, L = 2, 16
    params = init_params(kp, backbone_memory_size=cfg['backbone_memory_size'],
                         hidden_size=cfg['hidden_size'],
                         left_kernel_size=cfg['left_kernel_size'],
                         right_kernel_size=cfg['right_kernel_size'])
    x = jax.random.normal(kx, (B, cfg['backbone_memory_size'], L), jnp.float32)
    ref = _reference_forward(x, params,
                             left_kernel_size=cfg['left_kernel_size'],
                             right_kernel_size=cfg['right_kernel_size'],
                             dilation=cfg['dilation'])
    run = functools.partial(dfsmn_layer_bn_pre,
                            left_kernel_size=cfg['left_kernel_size'],
                            right_kernel_size=cfg['right_kernel_size'],
                            dilation=cfg['dilation'])

    # f32-matmul path: matches the unfused f32 reference tightly.
    out_f32 = jax.jit(functools.partial(run, matmul_dtype=jnp.float32))(x, params)
    jax.block_until_ready(out_f32)
    assert out_f32.shape == (B, cfg['backbone_memory_size'], L)
    assert jnp.allclose(out_f32, ref, rtol=1e-4, atol=1e-4), \
        float(jnp.max(jnp.abs(out_f32 - ref)))

    # bf16-MXU path (default / recommended on v6e+): bf16-mantissa tolerance.
    out_bf16 = jax.jit(run)(x, params)
    jax.block_until_ready(out_bf16)
    assert jnp.allclose(out_bf16, ref, rtol=5e-2, atol=5e-2), \
        float(jnp.max(jnp.abs(out_bf16 - ref)))

    # --- case 2: multi-tile grid (time tiling + halos + dilation) -----------
    cfg2 = dict(backbone_memory_size=32, hidden_size=48,
                left_kernel_size=3, right_kernel_size=2, dilation=2)
    B2, L2 = 3, 200
    params2 = init_params(kp2, backbone_memory_size=cfg2['backbone_memory_size'],
                          hidden_size=cfg2['hidden_size'],
                          left_kernel_size=cfg2['left_kernel_size'],
                          right_kernel_size=cfg2['right_kernel_size'])
    x2 = jax.random.normal(kx2, (B2, cfg2['backbone_memory_size'], L2), jnp.float32)
    ref2 = _reference_forward(x2, params2,
                              left_kernel_size=cfg2['left_kernel_size'],
                              right_kernel_size=cfg2['right_kernel_size'],
                              dilation=cfg2['dilation'])
    out2 = jax.jit(functools.partial(
        dfsmn_layer_bn_pre,
        left_kernel_size=cfg2['left_kernel_size'],
        right_kernel_size=cfg2['right_kernel_size'],
        dilation=cfg2['dilation'],
        time_tile=64,                      # force T = 4 tiles to exercise halos
        matmul_dtype=jnp.float32))(x2, params2)
    jax.block_until_ready(out2)
    assert out2.shape == x2.shape
    assert jnp.allclose(out2, ref2, rtol=1e-4, atol=1e-4), \
        float(jnp.max(jnp.abs(out2 - ref2)))

    print("KERNEL_OK")
</pallas_src>

<mosaic_0001>
module attributes {stable_mosaic.version = 11 : i64} {
  func.func @_dfsmn_layer_kernel(%arg0: i32, %arg1: i32, %arg2: memref<2xf32, #tpu.memory_space<smem>>, %arg3: memref<1x16x128xf32, #tpu.memory_space<vmem>>, %arg4: memref<1x1x8x128xf32, #tpu.memory_space<vmem>>, %arg5: memref<5x128xf32, #tpu.memory_space<vmem>>, %arg6: memref<1x128xf32, #tpu.memory_space<vmem>>, %arg7: memref<128x128xf32, #tpu.memory_space<vmem>>, %arg8: memref<1x128xf32, #tpu.memory_space<vmem>>, %arg9: memref<128x128xf32, #tpu.memory_space<vmem>>, %arg10: memref<1x128xf32, #tpu.memory_space<vmem>>, %arg11: memref<1x16x128xf32, #tpu.memory_space<vmem>>) attributes {dimension_semantics = [#tpu.dimension_semantics<parallel>, #tpu.dimension_semantics<parallel>], iteration_bounds = array<i64: 2, 1>, scalar_prefetch = 0 : i64, scratch_operands = 0 : i64, tpu.core_type = #tpu.core_type<tc>, window_params = [{transform_indices = @transform_0, window_bounds = array<i64: 2>}, {transform_indices = @transform_1, window_bounds = array<i64: 1, 16, 128>}, {transform_indices = @transform_2, window_bounds = array<i64: 1, 1, 8, 128>}, {pipeline_mode = #tpu.pipeline_mode<synchronous>, transform_indices = @transform_3, window_bounds = array<i64: 5, 128>}, {pipeline_mode = #tpu.pipeline_mode<synchronous>, transform_indices = @transform_4, window_bounds = array<i64: 1, 128>}, {pipeline_mode = #tpu.pipeline_mode<synchronous>, transform_indices = @transform_5, window_bounds = array<i64: 128, 128>}, {pipeline_mode = #tpu.pipeline_mode<synchronous>, transform_indices = @transform_6, window_bounds = array<i64: 1, 128>}, {pipeline_mode = #tpu.pipeline_mode<synchronous>, transform_indices = @transform_7, window_bounds = array<i64: 128, 128>}, {pipeline_mode = #tpu.pipeline_mode<synchronous>, transform_indices = @transform_8, window_bounds = array<i64: 1, 128>}, {transform_indices = @transform_9, window_bounds = array<i64: 1, 16, 128>}]} {
    %c0 = arith.constant 0 : index
    %0 = memref.load %arg2[%c0] : memref<2xf32, #tpu.memory_space<smem>>
    %c1 = arith.constant 1 : index
    %1 = memref.load %arg2[%c1] : memref<2xf32, #tpu.memory_space<smem>>
    %c0_0 = arith.constant 0 : index
    %c0_1 = arith.constant 0 : index
    %c0_2 = arith.constant 0 : index
    %2 = vector.load %arg3[%c0_0, %c0_1, %c0_2] : memref<1x16x128xf32, #tpu.memory_space<vmem>>, vector<1x16x128xf32>
    %3 = vector.shape_cast %2 : vector<1x16x128xf32> to vector<16x128xf32>
    %c0_3 = arith.constant 0 : index
    %c0_4 = arith.constant 0 : index
    %c0_5 = arith.constant 0 : index
    %c0_6 = arith.constant 0 : index
    %4 = vector.load %arg4[%c0_3, %c0_4, %c0_5, %c0_6] : memref<1x1x8x128xf32, #tpu.memory_space<vmem>>, vector<1x1x8x128xf32>
    %5 = vector.shape_cast %4 : vector<1x1x8x128xf32> to vector<8x128xf32>
    %6 = tpu.concatenate %3, %5 in 0 : vector<16x128xf32>, vector<8x128xf32> -> vector<24x128xf32>
    %c0_7 = arith.constant 0 : index
    %c0_8 = arith.constant 0 : index
    %7 = vector.load %arg5[%c0_7, %c0_8] : memref<5x128xf32, #tpu.memory_space<vmem>>, vector<5x128xf32>
    %8 = vector.extract_strided_slice %6 {offsets = [0, 0], sizes = [16, 128], strides = [1, 1]} : vector<24x128xf32> to vector<16x128xf32>
    %9 = vector.extract_strided_slice %7 {offsets = [0, 0], sizes = [1, 128], strides = [1, 1]} : vector<5x128xf32> to vector<1x128xf32>
    %10 = vector.shape_cast %9 : vector<1x128xf32> to vector<128xf32>
    %11 = vector.shape_cast %10 : vector<128xf32> to vector<1x128xf32>
    %12 = vector.broadcast %11 : vector<1x128xf32> to vector<16x128xf32>
    %13 = arith.mulf %8, %12 : vector<16x128xf32>
    %14 = vector.extract_strided_slice %6 {offsets = [1, 0], sizes = [16, 128], strides = [1, 1]} : vector<24x128xf32> to vector<16x128xf32>
    %15 = vector.extract_strided_slice %7 {offsets = [1, 0], sizes = [1, 128], strides = [1, 1]} : vector<5x128xf32> to vector<1x128xf32>
    %16 = vector.shape_cast %15 : vector<1x128xf32> to vector<128xf32>
    %17 = vector.shape_cast %16 : vector<128xf32> to vector<1x128xf32>
    %18 = vector.broadcast %17 : vector<1x128xf32> to vector<16x128xf32>
    %19 = arith.mulf %14, %18 : vector<16x128xf32>
    %20 = arith.addf %13, %19 : vector<16x128xf32>
    %21 = vector.extract_strided_slice %6 {offsets = [2, 0], sizes = [16, 128], strides = [1, 1]} : vector<24x128xf32> to vector<16x128xf32>
    %22 = vector.extract_strided_slice %7 {offsets = [2, 0], sizes = [1, 128], strides = [1, 1]} : vector<5x128xf32> to vector<1x128xf32>
    %23 = vector.shape_cast %22 : vector<1x128xf32> to vector<128xf32>
    %24 = vector.shape_cast %23 : vector<128xf32> to vector<1x128xf32>
    %25 = vector.broadcast %24 : vector<1x128xf32> to vector<16x128xf32>
    %26 = arith.mulf %21, %25 : vector<16x128xf32>
    %27 = arith.addf %20, %26 : vector<16x128xf32>
    %28 = vector.extract_strided_slice %6 {offsets = [3, 0], sizes = [16, 128], strides = [1, 1]} : vector<24x128xf32> to vector<16x128xf32>
    %29 = vector.extract_strided_slice %7 {offsets = [3, 0], sizes = [1, 128], strides = [1, 1]} : vector<5x128xf32> to vector<1x128xf32>
    %30 = vector.shape_cast %29 : vector<1x128xf32> to vector<128xf32>
    %31 = vector.shape_cast %30 : vector<128xf32> to vector<1x128xf32>
    %32 = vector.broadcast %31 : vector<1x128xf32> to vector<16x128xf32>
    %33 = arith.mulf %28, %32 : vector<16x128xf32>
    %34 = arith.addf %27, %33 : vector<16x128xf32>
    %35 = vector.extract_strided_slice %6 {offsets = [4, 0], sizes = [16, 128], strides = [1, 1]} : vector<24x128xf32> to vector<16x128xf32>
    %36 = vector.extract_strided_slice %7 {offsets = [4, 0], sizes = [1, 128], strides = [1, 1]} : vector<5x128xf32> to vector<1x128xf32>
    %37 = vector.shape_cast %36 : vector<1x128xf32> to vector<128xf32>
    %38 = vector.shape_cast %37 : vector<128xf32> to vector<1x128xf32>
    %39 = vector.broadcast %38 : vector<1x128xf32> to vector<16x128xf32>
    %40 = arith.mulf %35, %39 : vector<16x128xf32>
    %41 = arith.addf %34, %40 : vector<16x128xf32>
    %42 = vector.extract_strided_slice %6 {offsets = [2, 0], sizes = [16, 128], strides = [1, 1]} : vector<24x128xf32> to vector<16x128xf32>
    %c0_9 = arith.constant 0 : index
    %c0_10 = arith.constant 0 : index
    %43 = vector.load %arg6[%c0_9, %c0_10] : memref<1x128xf32, #tpu.memory_space<vmem>>, vector<1x128xf32>
    %44 = vector.broadcast %43 : vector<1x128xf32> to vector<16x128xf32>
    %45 = arith.addf %41, %44 : vector<16x128xf32>
    %cst = arith.constant 0.000000e+00 : f32
    %46 = vector.broadcast %cst : f32 to vector<16x128xf32>
    %47 = arith.cmpf oge, %45, %46 : vector<16x128xf32>
    %48 = vector.broadcast %0 : f32 to vector<16x128xf32>
    %49 = arith.mulf %48, %45 : vector<16x128xf32>
    %50 = arith.select %47, %45, %49 : vector<16x128xi1>, vector<16x128xf32>
    %51 = arith.addf %50, %42 : vector<16x128xf32>
    %c0_11 = arith.constant 0 : index
    %c0_12 = arith.constant 0 : index
    %52 = vector.load %arg7[%c0_11, %c0_12] : memref<128x128xf32, #tpu.memory_space<vmem>>, vector<128x128xf32>
    %cst_13 = arith.constant dense<0.000000e+00> : vector<16x128xf32>
    %53 = tpu.matmul %51, %52, %cst_13 {dimension_numbers = #tpu.dot_dimension_numbers<[1], [0], [0], [1], [0, 0, 1, 1], [], []>} : vector<16x128xf32>, vector<128x128xf32>, vector<16x128xf32> -> vector<16x128xf32>
    %c0_14 = arith.constant 0 : index
    %c0_15 = arith.constant 0 : index
    %54 = vector.load %arg8[%c0_14, %c0_15] : memref<1x128xf32, #tpu.memory_space<vmem>>, vector<1x128xf32>
    %55 = vector.broadcast %54 : vector<1x128xf32> to vector<16x128xf32>
    %56 = arith.addf %53, %55 : vector<16x128xf32>
    %cst_16 = arith.constant 0.000000e+00 : f32
    %57 = vector.broadcast %cst_16 : f32 to vector<16x128xf32>
    %58 = arith.maximumf %56, %57 : vector<16x128xf32>
    %c0_17 = arith.constant 0 : index
    %c0_18 = arith.constant 0 : index
    %59 = vector.load %arg9[%c0_17, %c0_18] : memref<128x128xf32, #tpu.memory_space<vmem>>, vector<128x128xf32>
    %cst_19 = arith.constant dense<0.000000e+00> : vector<16x128xf32>
    %60 = tpu.matmul %58, %59, %cst_19 {dimension_numbers = #tpu.dot_dimension_numbers<[1], [0], [0], [1], [0, 0, 1, 1], [], []>} : vector<16x128xf32>, vector<128x128xf32>, vector<16x128xf32> -> vector<16x128xf32>
    %c0_20 = arith.constant 0 : index
    %c0_21 = arith.constant 0 : index
    %61 = vector.load %arg10[%c0_20, %c0_21] : memref<1x128xf32, #tpu.memory_space<vmem>>, vector<1x128xf32>
    %62 = vector.broadcast %61 : vector<1x128xf32> to vector<16x128xf32>
    %63 = arith.addf %60, %62 : vector<16x128xf32>
    %cst_22 = arith.constant 0.000000e+00 : f32
    %64 = vector.broadcast %cst_22 : f32 to vector<16x128xf32>
    %65 = arith.cmpf oge, %63, %64 : vector<16x128xf32>
    %66 = vector.broadcast %1 : f32 to vector<16x128xf32>
    %67 = arith.mulf %66, %63 : vector<16x128xf32>
    %68 = arith.select %65, %63, %67 : vector<16x128xi1>, vector<16x128xf32>
    %69 = arith.addf %68, %51 : vector<16x128xf32>
    %c0_23 = arith.constant 0 : index
    %c0_24 = arith.constant 0 : index
    %c0_25 = arith.constant 0 : index
    %70 = vector.load %arg11[%c0_23, %c0_24, %c0_25] : memref<1x16x128xf32, #tpu.memory_space<vmem>>, vector<1x16x128xf32>
    %71 = vector.shape_cast %70 : vector<1x16x128xf32> to vector<16x128xf32>
    %72 = vector.shape_cast %69 : vector<16x128xf32> to vector<1x16x128xf32>
    tpu.vector_store %arg11[%c0_23, %c0_24, %c0_25], %72 {strides = array<i32>} : memref<1x16x128xf32, #tpu.memory_space<vmem>>, vector<1x16x128xf32>,
    return
  }
  func.func @transform_0(%arg0: i32, %arg1: i32) -> i32 {
    %c0_i32 = arith.constant 0 : i32
    %c0_i32_0 = arith.constant 0 : i32
    return %c0_i32 : i32
  }
  func.func @transform_1(%arg0: i32, %arg1: i32) -> (i32, i32, i32) {
    %c0_i32 = arith.constant 0 : i32
    %c0_i32_0 = arith.constant 0 : i32
    return %arg0, %arg1, %c0_i32 : i32, i32, i32
  }
  func.func @transform_2(%arg0: i32, %arg1: i32) -> (i32, i32, i32, i32) {
    %c0_i32 = arith.constant 0 : i32
    %c0_i32_0 = arith.constant 0 : i32
    %c0_i32_1 = arith.constant 0 : i32
    return %arg0, %arg1, %c0_i32, %c0_i32_0 : i32, i32, i32, i32
  }
  func.func @transform_3(%arg0: i32, %arg1: i32) -> (i32, i32) {
    %c0_i32 = arith.constant 0 : i32
    %c0_i32_0 = arith.constant 0 : i32
    %c0_i32_1 = arith.constant 0 : i32
    return %c0_i32, %c0_i32_0 : i32, i32
  }
  func.func @transform_4(%arg0: i32, %arg1: i32) -> (i32, i32) {
    %c0_i32 = arith.constant 0 : i32
    %c0_i32_0 = arith.constant 0 : i32
    %c0_i32_1 = arith.constant 0 : i32
    return %c0_i32, %c0_i32_0 : i32, i32
  }
  func.func @transform_5(%arg0: i32, %arg1: i32) -> (i32, i32) {
    %c0_i32 = arith.constant 0 : i32
    %c0_i32_0 = arith.constant 0 : i32
    %c0_i32_1 = arith.constant 0 : i32
    return %c0_i32, %c0_i32_0 : i32, i32
  }
  func.func @transform_6(%arg0: i32, %arg1: i32) -> (i32, i32) {
    %c0_i32 = arith.constant 0 : i32
    %c0_i32_0 = arith.constant 0 : i32
    %c0_i32_1 = arith.constant 0 : i32
    return %c0_i32, %c0_i32_0 : i32, i32
  }
  func.func @transform_7(%arg0: i32, %arg1: i32) -> (i32, i32) {
    %c0_i32 = arith.constant 0 : i32
    %c0_i32_0 = arith.constant 0 : i32
    %c0_i32_1 = arith.constant 0 : i32
    return %c0_i32, %c0_i32_0 : i32, i32
  }
  func.func @transform_8(%arg0: i32, %arg1: i32) -> (i32, i32) {
    %c0_i32 = arith.constant 0 : i32
    %c0_i32_0 = arith.constant 0 : i32
    %c0_i32_1 = arith.constant 0 : i32
    return %c0_i32, %c0_i32_0 : i32, i32
  }
  func.func @transform_9(%arg0: i32, %arg1: i32) -> (i32, i32, i32) {
    %c0_i32 = arith.constant 0 : i32
    %c0_i32_0 = arith.constant 0 : i32
    return %arg0, %arg1, %c0_i32 : i32, i32, i32
  }
}

</mosaic_0001>

<llo_original>
// kernel: dfsmn_layer_bn_pre.1
$region0: #{dfsmn_layer_bn_pre.1}
  #allocation0 [shape = 'u32[]', space=smem, size = 0x4, offset = 0x4, fixed_abs, tag = 'smem constant byte address 0x4 - core index']
  #allocation1 [shape = 'u32[144,128]{1,0:T(1,128)}', space=vmem, size = 0x12000, scoped, tag = 'internal scratch']
  %s0 = inlined_call_operand.vmem [shape: f32[2], index: 0, kind: input, shape index: {}]
  %s1 = inlined_call_operand.vmem [shape: f32[2,16,128], index: 1, kind: input, shape index: {}]
  %s2 = inlined_call_operand.vmem [shape: f32[2,1,8,128], index: 2, kind: input, shape index: {}]
  %s3 = inlined_call_operand.vmem [shape: f32[5,128], index: 3, kind: input, shape index: {}]
  %s4 = inlined_call_operand.vmem [shape: f32[1,128], index: 4, kind: input, shape index: {}]
  %s5 = inlined_call_operand.vmem [shape: f32[128,128], index: 5, kind: input, shape index: {}]
  %s6 = inlined_call_operand.vmem [shape: f32[1,128], index: 6, kind: input, shape index: {}]
  %s7 = inlined_call_operand.vmem [shape: f32[128,128], index: 7, kind: input, shape index: {}]
  %s8 = inlined_call_operand.vmem [shape: f32[1,128], index: 8, kind: input, shape index: {}]
  %s9 = inlined_call_operand.vmem [shape: f32[2,16,128], index: 9, kind: output, shape index: {}]
  %s10 = sld [smem:[#allocation0]]
  $region73: #{dfsmn_layer_bn_pre.1} parent=0
    _
  %s12 = ssub.s32 1, %s10
  %s13 = scalar_select 0, %s12, %s10
  $region1: #{dfsmn_layer_bn_pre.1} parent=0
    #allocation2 [shape = 'u8[512]{0}', space=smem, size = 0x200, scoped, tag = 'input window, operand 0, single buffered']
    #allocation3 [shape = 's32[2]{0}', space=sflag, size = 0x8, scoped, tag = 'scoped memory for dfsmn_layer_bn_pre.1']
    %14 = vsyncpa [#allocation3], 0
    loop: start=0, step=1, limit=4
    $region2: #{dfsmn_layer_bn_pre.1} parent=1 // loop_pre_header
      _
    $region3: #{dfsmn_layer_bn_pre.1} parent=1 // loop_header
      %s16 = sphi 0, %s20
      %p17 = scmp.ge.s32.totalorder %s16, 4
      %s23 = sphi 0, %s35
      %s24 = sphi 0, %s31
      %s25 = sphi 0, %s23
      %s26 = sphi 0, %s24
      %s27 = sphi 0, %s25
      %s28 = sphi 0, %s26
      %s36 = sphi 0, %s36
      %s38 = sphi 0, %s36
      %s39 = sphi 0, %s38
      %s53 = sphi 0, %s39
      %s61 = sphi 0, %s63
      %s64 = sphi 0, %s61
      %s65 = sphi 0, %s64
      %s81 = sphi 0, %s65
      %s89 = sphi 0, %s91
      %s92 = sphi 0, %s89
      %s93 = sphi 0, %s92
      %s109 = sphi 0, %s93
      %s113 = sphi 0, %s113
      %s115 = sphi 0, %s113
      %s116 = sphi 0, %s115
      %s130 = sphi 0, %s116
      %s134 = sphi 0, %s134
      %s136 = sphi 0, %s134
      %s137 = sphi 0, %s136
      %s151 = sphi 0, %s137
      %s155 = sphi 0, %s155
      %s157 = sphi 0, %s155
      %s158 = sphi 0, %s157
      %s172 = sphi 0, %s158
      %s176 = sphi 0, %s176
      %s178 = sphi 0, %s176
      %s179 = sphi 0, %s178
      %s193 = sphi 0, %s179
      %s197 = sphi 0, %s197
      %s199 = sphi 0, %s197
      %s200 = sphi 0, %s199
      %s214 = sphi 0, %s200
      %s218 = sphi 0, %s218
      %s220 = sphi 0, %s218
      %s221 = sphi 0, %s220
      %s235 = sphi 0, %s221
      %s243 = sphi 0, %s245
      %s246 = sphi 0, %s243
      %s247 = sphi 0, %s246
      %s263 = sphi 0, %s247
    $region4: #{dfsmn_layer_bn_pre.1} parent=1 // loop_header_branch
      %19 = sbr.rel (%p17) target = $region8
    $region5: #{dfsmn_layer_bn_pre.1} parent=1 // loop_body
      %s21 = ssub.s32 %s16, 1
      %s22 = ssub.s32 %s16, 2
      %s29 = sadd.s32 1, %s24
      %p30 = scmp.ge.s32.totalorder %s29, 1
      %s31 = scalar_select %p30, 0, %s29
      %s32 = sadd.s32 1, %s23
      %s33 = scalar_select %p30, %s32, %s23
      %p34 = scmp.ge.s32.totalorder %s33, 2
      %s35 = scalar_select %p34, 0, %s33
      %s37 = sadd.s32 %s36, 1
      %p40 = scmp.eq.s32.totalorder %s16, 1
      %p41 = scmp.ne.s32.totalorder %s36, %s38
      %p42 = scmp.eq.s32.totalorder %s16, 0
      %p43 = por %p41, %p42
      %p44 = scmp.ne.s32.totalorder %s36, %s38
      %p45 = scmp.eq.s32.totalorder %s21, 1
      %p46 = por %p44, %p45
      %p47 = scmp.ne.s32.totalorder %s38, %s39
      %p48 = scmp.eq.s32.totalorder %s21, 0
      %p49 = por %p47, %p48
      %p50 = scmp.ne.s32.totalorder %s38, %s39
      %p51 = scmp.eq.s32.totalorder %s22, 1
      %p52 = por %p50, %p51
      %p54 = scmp.ne.s32.totalorder %s39, %s53
      %p55 = scmp.eq.s32.totalorder %s22, 0
      %p56 = por %p54, %p55
      %s57 = ssub.s32 %s23, %s35
      %s58 = ssub.s32 %s24, %s31
      %s59 = sor.u32 %s57, %s58
      %p60 = scmp.eq.s32.totalorder %s59, 0
      %s62 = sadd.s32 %s61, 1
      %s63 = scalar_select %p60, %s61, %s62
      %p66 = pneg %p60
      %p67 = scmp.eq.s32.totalorder %s16, 1
      %p68 = por %p66, %p67
      %p69 = scmp.ne.s32.totalorder %s61, %s64
      %p70 = scmp.eq.s32.totalorder %s16, 0
      %p71 = por %p69, %p70
      %p72 = scmp.ne.s32.totalorder %s61, %s64
      %p73 = scmp.eq.s32.totalorder %s21, 1
      %p74 = por %p72, %p73
      %p75 = scmp.ne.s32.totalorder %s64, %s65
      %p76 = scmp.eq.s32.totalorder %s21, 0
      %p77 = por %p75, %p76
      %p78 = scmp.ne.s32.totalorder %s64, %s65
      %p79 = scmp.eq.s32.totalorder %s22, 1
      %p80 = por %p78, %p79
      %p82 = scmp.ne.s32.totalorder %s65, %s81
      %p83 = scmp.eq.s32.totalorder %s22, 0
      %p84 = por %p82, %p83
      %s85 = ssub.s32 %s23, %s35
      %s86 = ssub.s32 %s24, %s31
      %s87 = sor.u32 %s85, %s86
      %p88 = scmp.eq.s32.totalorder %s87, 0
      %s90 = sadd.s32 %s89, 1
      %s91 = scalar_select %p88, %s89, %s90
      %p94 = pneg %p88
      %p95 = scmp.eq.s32.totalorder %s16, 1
      %p96 = por %p94, %p95
      %p97 = scmp.ne.s32.totalorder %s89, %s92
      %p98 = scmp.eq.s32.totalorder %s16, 0
      %p99 = por %p97, %p98
      %p100 = scmp.ne.s32.totalorder %s89, %s92
      %p101 = scmp.eq.s32.totalorder %s21, 1
      %p102 = por %p100, %p101
      %p103 = scmp.ne.s32.totalorder %s92, %s93
      %p104 = scmp.eq.s32.totalorder %s21, 0
      %p105 = por %p103, %p104
      %p106 = scmp.ne.s32.totalorder %s92, %s93
      %p107 = scmp.eq.s32.totalorder %s22, 1
      %p108 = por %p106, %p107
      %p110 = scmp.ne.s32.totalorder %s93, %s109
      %p111 = scmp.eq.s32.totalorder %s22, 0
      %p112 = por %p110, %p111
      %s114 = sadd.s32 %s113, 1
      %p117 = scmp.eq.s32.totalorder %s16, 1
      %p118 = scmp.ne.s32.totalorder %s113, %s115
      %p119 = scmp.eq.s32.totalorder %s16, 0
      %p120 = por %p118, %p119
      %p121 = scmp.ne.s32.totalorder %s113, %s115
      %p122 = scmp.eq.s32.totalorder %s21, 1
      %p123 = por %p121, %p122
      %p124 = scmp.ne.s32.totalorder %s115, %s116
      %p125 = scmp.eq.s32.totalorder %s21, 0
      %p126 = por %p124, %p125
      %p127 = scmp.ne.s32.totalorder %s115, %s116
      %p128 = scmp.eq.s32.totalorder %s22, 1
      %p129 = por %p127, %p128
      %p131 = scmp.ne.s32.totalorder %s116, %s130
      %p132 = scmp.eq.s32.totalorder %s22, 0
      %p133 = por %p131, %p132
      %s135 = sadd.s32 %s134, 1
      %p138 = scmp.eq.s32.totalorder %s16, 1
      %p139 = scmp.ne.s32.totalorder %s134, %s136
      %p140 = scmp.eq.s32.totalorder %s16, 0
      %p141 = por %p139, %p140
      %p142 = scmp.ne.s32.totalorder %s134, %s136
      %p143 = scmp.eq.s32.totalorder %s21, 1
      %p144 = por %p142, %p143
      %p145 = scmp.ne.s32.totalorder %s136, %s137
      %p146 = scmp.eq.s32.totalorder %s21, 0
      %p147 = por %p145, %p146
      %p148 = scmp.ne.s32.totalorder %s136, %s137
      %p149 = scmp.eq.s32.totalorder %s22, 1
      %p150 = por %p148, %p149
      %p152 = scmp.ne.s32.totalorder %s137, %s151
      %p153 = scmp.eq.s32.totalorder %s22, 0
      %p154 = por %p152, %p153
      %s156 = sadd.s32 %s155, 1
      %p159 = scmp.eq.s32.totalorder %s16, 1
      %p160 = scmp.ne.s32.totalorder %s155, %s157
      %p161 = scmp.eq.s32.totalorder %s16, 0
      %p162 = por %p160, %p161
      %p163 = scmp.ne.s32.totalorder %s155, %s157
      %p164 = scmp.eq.s32.totalorder %s21, 1
      %p165 = por %p163, %p164
      %p166 = scmp.ne.s32.totalorder %s157, %s158
      %p167 = scmp.eq.s32.totalorder %s21, 0
      %p168 = por %p166, %p167
      %p169 = scmp.ne.s32.totalorder %s157, %s158
      %p170 = scmp.eq.s32.totalorder %s22, 1
      %p171 = por %p169, %p170
      %p173 = scmp.ne.s32.totalorder %s158, %s172
      %p174 = scmp.eq.s32.totalorder %s22, 0
      %p175 = por %p173, %p174
      %s177 = sadd.s32 %s176, 1
      %p180 = scmp.eq.s32.totalorder %s16, 1
      %p181 = scmp.ne.s32.totalorder %s176, %s178
      %p182 = scmp.eq.s32.totalorder %s16, 0
      %p183 = por %p181, %p182
      %p184 = scmp.ne.s32.totalorder %s176, %s178
      %p185 = scmp.eq.s32.totalorder %s21, 1
      %p186 = por %p184, %p185
      %p187 = scmp.ne.s32.totalorder %s178, %s179
      %p188 = scmp.eq.s32.totalorder %s21, 0
      %p189 = por %p187, %p188
      %p190 = scmp.ne.s32.totalorder %s178, %s179
      %p191 = scmp.eq.s32.totalorder %s22, 1
      %p192 = por %p190, %p191
      %p194 = scmp.ne.s32.totalorder %s179, %s193
      %p195 = scmp.eq.s32.totalorder %s22, 0
      %p196 = por %p194, %p195
      %s198 = sadd.s32 %s197, 1
      %p201 = scmp.eq.s32.totalorder %s16, 1
      %p202 = scmp.ne.s32.totalorder %s197, %s199
      %p203 = scmp.eq.s32.totalorder %s16, 0
      %p204 = por %p202, %p203
      %p205 = scmp.ne.s32.totalorder %s197, %s199
      %p206 = scmp.eq.s32.totalorder %s21, 1
      %p207 = por %p205, %p206
      %p208 = scmp.ne.s32.totalorder %s199, %s200
      %p209 = scmp.eq.s32.totalorder %s21, 0
      %p210 = por %p208, %p209
      %p211 = scmp.ne.s32.totalorder %s199, %s200
      %p212 = scmp.eq.s32.totalorder %s22, 1
      %p213 = por %p211, %p212
      %p215 = scmp.ne.s32.totalorder %s200, %s214
      %p216 = scmp.eq.s32.totalorder %s22, 0
      %p217 = por %p215, %p216
      %s219 = sadd.s32 %s218, 1
      %p222 = scmp.eq.s32.totalorder %s16, 1
      %p223 = scmp.ne.s32.totalorder %s218, %s220
      %p224 = scmp.eq.s32.totalorder %s16, 0
      %p225 = por %p223, %p224
      %p226 = scmp.ne.s32.totalorder %s218, %s220
      %p227 = scmp.eq.s32.totalorder %s21, 1
      %p228 = por %p226, %p227
      %p229 = scmp.ne.s32.totalorder %s220, %s221
      %p230 = scmp.eq.s32.totalorder %s21, 0
      %p231 = por %p229, %p230
      %p232 = scmp.ne.s32.totalorder %s220, %s221
      %p233 = scmp.eq.s32.totalorder %s22, 1
      %p234 = por %p232, %p233
      %p236 = scmp.ne.s32.totalorder %s221, %s235
      %p237 = scmp.eq.s32.totalorder %s22, 0
      %p238 = por %p236, %p237
      %s239 = ssub.s32 %s23, %s35
      %s240 = ssub.s32 %s24, %s31
      %s241 = sor.u32 %s239, %s240
      %p242 = scmp.eq.s32.totalorder %s241, 0
      %s244 = sadd.s32 %s243, 1
      %s245 = scalar_select %p242, %s243, %s244
      %p248 = pneg %p242
      %p249 = scmp.eq.s32.totalorder %s16, 1
      %p250 = por %p248, %p249
      %p251 = scmp.ne.s32.totalorder %s243, %s246
      %p252 = scmp.eq.s32.totalorder %s16, 0
      %p253 = por %p251, %p252
      %p254 = scmp.ne.s32.totalorder %s243, %s246
      %p255 = scmp.eq.s32.totalorder %s21, 1
      %p256 = por %p254, %p255
      %p257 = scmp.ne.s32.totalorder %s246, %s247
      %p258 = scmp.eq.s32.totalorder %s21, 0
      %p259 = por %p257, %p258
      %p260 = scmp.ne.s32.totalorder %s246, %s247
      %p261 = scmp.eq.s32.totalorder %s22, 1
      %p262 = por %p260, %p261
      %p264 = scmp.ne.s32.totalorder %s247, %s263
      %p265 = scmp.eq.s32.totalorder %s22, 0
      %p266 = por %p264, %p265
      %p267 = scmp.le.s32.totalorder 1, %s16
      %p268 = scmp.lt.s32.totalorder %s16, 3
      %p269 = pnand %p267, %p268
      %p270 = pneg %p269
      // Predicated region
      $region9: #{dfsmn_layer_bn_pre.1} parent=5 // pred_check
        _
      $region10: #{dfsmn_layer_bn_pre.1} parent=5 // pred_check_branch
        %272 = sbr.rel (%p269) target = $region12
      $region11: #{dfsmn_layer_bn_pre.1} parent=5 // pred_region
        %s273 = ssub.s32 %s16, 1
        // Predicated region
        $region13: #{dfsmn_layer_bn_pre.1} parent=11 // pred_check
          %p274 = pneg %p49
        $region14: #{dfsmn_layer_bn_pre.1} parent=11 // pred_check_branch
          %276 = sbr.rel (%p274) target = $region16
        $region15: #{dfsmn_layer_bn_pre.1} parent=11 // pred_region
          %s278 = ssub.s32 16, 16
          %279 = vsyncadd [#allocation3], %s278
          %s281 = sshll.u32 %s0, 4
          %s282 = int_to_ptr.vmem [resolvable:$true] %s281
          %284 = dma.vmem_to_smem %s282, 16, [#allocation2], [#allocation3]
        $region16: #{dfsmn_layer_bn_pre.1} parent=11 // pred_fallthru
          _
        // Predicated region
        $region17: #{dfsmn_layer_bn_pre.1} parent=11 // pred_check
          %p285 = pneg %p126
        $region18: #{dfsmn_layer_bn_pre.1} parent=11 // pred_check_branch
          %287 = sbr.rel (%p285) target = $region20
        $region19: #{dfsmn_layer_bn_pre.1} parent=11 // pred_region
          _
        $region20: #{dfsmn_layer_bn_pre.1} parent=11 // pred_fallthru
          _
        // Predicated region
        $region21: #{dfsmn_layer_bn_pre.1} parent=11 // pred_check
          %p288 = pneg %p147
        $region22: #{dfsmn_layer_bn_pre.1} parent=11 // pred_check_branch
          %290 = sbr.rel (%p288) target = $region24
        $region23: #{dfsmn_layer_bn_pre.1} parent=11 // pred_region
          _
        $region24: #{dfsmn_layer_bn_pre.1} parent=11 // pred_fallthru
          _
        // Predicated region
        $region25: #{dfsmn_layer_bn_pre.1} parent=11 // pred_check
          %p291 = pneg %p168
        $region26: #{dfsmn_layer_bn_pre.1} parent=11 // pred_check_branch
          %293 = sbr.rel (%p291) target = $region28
        $region27: #{dfsmn_layer_bn_pre.1} parent=11 // pred_region
          _
        $region28: #{dfsmn_layer_bn_pre.1} parent=11 // pred_fallthru
          _
        // Predicated region
        $region29: #{dfsmn_layer_bn_pre.1} parent=11 // pred_check
          %p294 = pneg %p189
        $region30: #{dfsmn_layer_bn_pre.1} parent=11 // pred_check_branch
          %296 = sbr.rel (%p294) target = $region32
        $region31: #{dfsmn_layer_bn_pre.1} parent=11 // pred_region
          _
        $region32: #{dfsmn_layer_bn_pre.1} parent=11 // pred_fallthru
          _
        // Predicated region
        $region33: #{dfsmn_layer_bn_pre.1} parent=11 // pred_check
          %p297 = pneg %p210
        $region34: #{dfsmn_layer_bn_pre.1} parent=11 // pred_check_branch
          %299 = sbr.rel (%p297) target = $region36
        $region35: #{dfsmn_layer_bn_pre.1} parent=11 // pred_region
          _
        $region36: #{dfsmn_layer_bn_pre.1} parent=11 // pred_fallthru
          _
        // Predicated region
        $region37: #{dfsmn_layer_bn_pre.1} parent=11 // pred_check
          %p300 = pneg %p231
        $region38: #{dfsmn_layer_bn_pre.1} parent=11 // pred_check_branch
          %302 = sbr.rel (%p300) target = $region40
        $region39: #{dfsmn_layer_bn_pre.1} parent=11 // pred_region
          _
        $region40: #{dfsmn_layer_bn_pre.1} parent=11 // pred_fallthru
          _
      $region12: #{dfsmn_layer_bn_pre.1} parent=5 // pred_fallthru
        _
      %p303 = scmp.lt.s32.totalorder %s16, 2
      // Predicated region
      $region41: #{dfsmn_layer_bn_pre.1} parent=5 // pred_check
        %p304 = pneg %p303
      $region42: #{dfsmn_layer_bn_pre.1} parent=5 // pred_check_branch
        %306 = sbr.rel (%p304) target = $region44
      $region43: #{dfsmn_layer_bn_pre.1} parent=5 // pred_region
        // Predicated region
        $region45: #{dfsmn_layer_bn_pre.1} parent=43 // pred_check
          %p307 = pneg %p71
        $region46: #{dfsmn_layer_bn_pre.1} parent=43 // pred_check_branch
          %309 = sbr.rel (%p307) target = $region48
        $region47: #{dfsmn_layer_bn_pre.1} parent=43 // pred_region
          %s310 = smul.u32 2, %s24
          %p311 = scmp.lt.s32.totalorder %s23, 1
          %s312 = scalar_select %p311, %s23, 1
          %p313 = scmp.lt.s32.totalorder %s310, 1
          %s314 = scalar_select %p313, %s310, 1
          %s315 = smul.addr %s312, 2
          %s316 = sadd.s32 %s314, %s315
          %s317 = smul.addr %s316, 8
          %s318 = scalar_lea.vmem %s1, %s317
          %s319 = smul.u32 2, %s24
        $region48: #{dfsmn_layer_bn_pre.1} parent=43 // pred_fallthru
          _
        // Predicated region
        $region49: #{dfsmn_layer_bn_pre.1} parent=43 // pred_check
          %p320 = pneg %p99
        $region50: #{dfsmn_layer_bn_pre.1} parent=43 // pred_check_branch
          %322 = sbr.rel (%p320) target = $region52
        $region51: #{dfsmn_layer_bn_pre.1} parent=43 // pred_region
          %p323 = scmp.lt.s32.totalorder %s23, 1
          %s324 = scalar_select %p323, %s23, 1
          %p325 = scmp.lt.s32.totalorder %s24, 0
          %s326 = scalar_select %p325, %s24, 0
          %s327 = sadd.s32 %s326, %s324
          %s328 = smul.addr %s327, 8
          %s329 = scalar_lea.vmem %s2, %s328
        $region52: #{dfsmn_layer_bn_pre.1} parent=43 // pred_fallthru
          _
      $region44: #{dfsmn_layer_bn_pre.1} parent=5 // pred_fallthru
        _
      %p330 = scmp.le.s32.totalorder 1, %s16
      %p331 = scmp.lt.s32.totalorder %s16, 3
      %p332 = pnand %p330, %p331
      %p333 = pneg %p332
      // Predicated region
      $region53: #{dfsmn_layer_bn_pre.1} parent=5 // pred_check
        _
      $region54: #{dfsmn_layer_bn_pre.1} parent=5 // pred_check_branch
        %335 = sbr.rel (%p332) target = $region56
      $region55: #{dfsmn_layer_bn_pre.1} parent=5 // pred_region
        %s336 = ssub.s32 %s16, 1
        // Predicated region
        $region57: #{dfsmn_layer_bn_pre.1} parent=55 // pred_check
          %p337 = pneg %p49
        $region58: #{dfsmn_layer_bn_pre.1} parent=55 // pred_check_branch
          %339 = sbr.rel (%p337) target = $region60
        $region59: #{dfsmn_layer_bn_pre.1} parent=55 // pred_region
          %340 = dma.done [#allocation3], 16
        $region60: #{dfsmn_layer_bn_pre.1} parent=55 // pred_fallthru
          _
        %341 = sfence
        %p342 = pneg %p49
        %p343 = pneg %p46
        %s344 = smul.u32 2, %s26
        %p345 = scmp.lt.s32.totalorder %s25, 1
        %s346 = scalar_select %p345, %s25, 1
        %p347 = scmp.lt.s32.totalorder %s344, 1
        %s348 = scalar_select %p347, %s344, 1
        %s349 = smul.addr %s346, 2
        %s350 = sadd.s32 %s348, %s349
        %s351 = smul.addr %s350, 8
        %s352 = scalar_lea.vmem %s1, %s351
        %p353 = pneg %p77
        %p354 = pneg %p74
        %p355 = scmp.lt.s32.totalorder %s25, 1
        %s356 = scalar_select %p355, %s25, 1
        %p357 = scmp.lt.s32.totalorder %s26, 0
        %s358 = scalar_select %p357, %s26, 0
        %s359 = sadd.s32 %s358, %s356
        %s360 = smul.addr %s359, 8
        %s361 = scalar_lea.vmem %s2, %s360
        %p362 = pneg %p105
        %p363 = pneg %p102
        %p364 = pneg %p126
        %p365 = pneg %p123
        %p366 = pneg %p147
        %p367 = pneg %p144
        %p368 = pneg %p168
        %p369 = pneg %p165
        %p370 = pneg %p189
        %p371 = pneg %p186
        %p372 = pneg %p210
        %p373 = pneg %p207
        %p374 = pneg %p231
        %p375 = pneg %p228
        %p376 = pneg %p259
        %p377 = pneg %p256
        %s378 = smul.u32 2, %s26
        %p379 = scmp.lt.s32.totalorder %s25, 1
        %s380 = scalar_select %p379, %s25, 1
        %p381 = scmp.lt.s32.totalorder %s378, 1
        %s382 = scalar_select %p381, %s378, 1
        %s383 = smul.addr %s380, 2
        %s384 = sadd.s32 %s382, %s383
        %s385 = smul.addr %s384, 8
        %s386 = scalar_lea.vmem %s9, %s385
        %s387 = smul.u32 2, %s26
        %p388 = scmp.lt.s32.totalorder %s25, 1
        %s389 = scalar_select %p388, %s25, 1
        %p390 = scmp.lt.s32.totalorder %s387, 1
        %s391 = scalar_select %p390, %s387, 1
        %s392 = smul.addr %s389, 2
        %s393 = sadd.s32 %s391, %s392
        %s394 = smul.addr %s393, 8
        %s395 = scalar_lea.vmem %s1, %s394
        %s396 = smul.u32 2, %s26
        %p397 = scmp.lt.s32.totalorder %s25, 1
        %s398 = scalar_select %p397, %s25, 1
        %p399 = scmp.lt.s32.totalorder %s26, 0
        %s400 = scalar_select %p399, %s26, 0
        %s401 = sadd.s32 %s400, %s398
        %s402 = smul.addr %s401, 8
        %s403 = scalar_lea.vmem %s2, %s402
        %s404 = smul.u32 2, %s26
        %p405 = scmp.lt.s32.totalorder %s25, 1
        %s406 = scalar_select %p405, %s25, 1
        %p407 = scmp.lt.s32.totalorder %s404, 1
        %s408 = scalar_select %p407, %s404, 1
        %s409 = smul.addr %s406, 2
        %s410 = sadd.s32 %s408, %s409
        %s411 = smul.addr %s410, 8
        %s412 = scalar_lea.vmem %s9, %s411
        %s413 = smul.u32 2, %s26
        %s414 = sld [smem:[#allocation2]]
        %s415 = sld [smem:[#allocation2 + $0x1]]
        %v416 = vld [vmem:[%s395] sm:$0xff]
        %v417 = vld [vmem:[%s395 + $0x8] sm:$0xff]
        %v418 = vld [vmem:[%s403] sm:$0xff]
        %v419 = vld [vmem:[%s3] sm:$0x1f]
        %v420 = vlaneseq
        %v421 = vshrl.u32 %v420, 7
        %v422 = vsub.s32 0, %v421
        %v423 = vrot.slane %v419, %v422
        %v424 = vmul.f32 %v416, %v423
        %v425 = vmul.f32 %v417, %v423
        %v426 = vlaneseq
        %v427 = vshrl.u32 %v426, 7
        %v428 = vsub.s32 1, %v427
        %v429 = vrot.slane %v419, %v428
        %v430 = vmul.f32 %v416, %v429
        %v431 = vmul.f32 %v417, %v429
        %v432 = vmul.f32 %v418, %v429
        %vm436 = vcmask 1046528
        %v437 = vrot.slane %v430, 1
        %v438 = vrot.slane %v431, 1
        %v439 = vsel %vm436, %v437, %v438
        %v440 = vrot.slane %v432, 1
        %v441 = vsel %vm436, %v438, %v440
        %v444 = vadd.f32 %v424, %v439
        %v445 = vadd.f32 %v425, %v441
        %v446 = vlaneseq
        %v447 = vshrl.u32 %v446, 7
        %v448 = vsub.s32 2, %v447
        %v449 = vrot.slane %v419, %v448
        %v450 = vmul.f32 %v416, %v449
        %v451 = vmul.f32 %v417, %v449
        %v452 = vmul.f32 %v418, %v449
        %vm456 = vcmask 1045504
        %v457 = vrot.slane %v450, 2
        %v458 = vrot.slane %v451, 2
        %v459 = vsel %vm456, %v457, %v458
        %v460 = vrot.slane %v452, 2
        %v461 = vsel %vm456, %v458, %v460
        %v464 = vadd.f32 %v444, %v459
        %v465 = vadd.f32 %v445, %v461
        %v466 = vlaneseq
        %v467 = vshrl.u32 %v466, 7
        %v468 = vsub.s32 3, %v467
        %v469 = vrot.slane %v419, %v468
        %v470 = vmul.f32 %v416, %v469
        %v471 = vmul.f32 %v417, %v469
        %v472 = vmul.f32 %v418, %v469
        %vm476 = vcmask 1044480
        %v477 = vrot.slane %v470, 3
        %v478 = vrot.slane %v471, 3
        %v479 = vsel %vm476, %v477, %v478
        %v480 = vrot.slane %v472, 3
        %v481 = vsel %vm476, %v478, %v480
        %v484 = vadd.f32 %v464, %v479
        %v485 = vadd.f32 %v465, %v481
        %v486 = vlaneseq
        %v487 = vshrl.u32 %v486, 7
        %v488 = vsub.s32 4, %v487
        %v489 = vrot.slane %v419, %v488
        %v490 = vmul.f32 %v416, %v489
        %v491 = vmul.f32 %v417, %v489
        %v492 = vmul.f32 %v418, %v489
        %vm496 = vcmask 1043456
        %v497 = vrot.slane %v490, 4
        %v498 = vrot.slane %v491, 4
        %v499 = vsel %vm496, %v497, %v498
        %v500 = vrot.slane %v492, 4
        %v501 = vsel %vm496, %v498, %v500
        %v504 = vadd.f32 %v484, %v499
        %v505 = vadd.f32 %v485, %v501
        %v506 = vld [vmem:[%s4] sm:$0x1]
        %v508 = vlaneseq
        %v509 = vshrl.u32 %v508, 7
        %v510 = vsub.s32 0, %v509
        %v511 = vrot.slane %v506, %v510
        %v513 = vadd.f32 %v504, %v511
        %v514 = vadd.f32 %v505, %v511
        %vm515 = vcmp.ge.f32.partialorder %v513, 0.0
        %vm516 = vcmp.ge.f32.partialorder %v514, 0.0
        %v517 = vstv %s414
        %v518 = vmul.f32 %v517, %v513
        %v519 = vmul.f32 %v517, %v514
        %v520 = vsel %vm515, %v513, %v518
        %v521 = vsel %vm516, %v514, %v519
        %v525 = vrot.slane %v416, 2
        %v526 = vrot.slane %v417, 2
        %v527 = vsel %vm456, %v525, %v526
        %v528 = vrot.slane %v418, 2
        %v529 = vsel %vm456, %v526, %v528
        %v532 = vadd.f32 %v520, %v527
        %v533 = vadd.f32 %v521, %v529
        %v534 = vld [vmem:[%s5] sm:$0xff]
        %v535 = vld [vmem:[%s5 + $0x8] sm:$0xff]
        %v536 = vld [vmem:[%s5 + $0x10] sm:$0xff]
        %v537 = vld [vmem:[%s5 + $0x18] sm:$0xff]
        %v538 = vld [vmem:[%s5 + $0x20] sm:$0xff]
        %v539 = vld [vmem:[%s5 + $0x28] sm:$0xff]
        %v540 = vld [vmem:[%s5 + $0x30] sm:$0xff]
        %v541 = vld [vmem:[%s5 + $0x38] sm:$0xff]
        %v542 = vld [vmem:[%s5 + $0x40] sm:$0xff]
        %v543 = vld [vmem:[%s5 + $0x48] sm:$0xff]
        %v544 = vld [vmem:[%s5 + $0x50] sm:$0xff]
        %v545 = vld [vmem:[%s5 + $0x58] sm:$0xff]
        %v546 = vld [vmem:[%s5 + $0x60] sm:$0xff]
        %v547 = vld [vmem:[%s5 + $0x68] sm:$0xff]
        %v548 = vld [vmem:[%s5 + $0x70] sm:$0xff]
        %v549 = vld [vmem:[%s5 + $0x78] sm:$0xff]
        %v550 = vld [vmem:[%s6] sm:$0x1]
        %v552 = vlaneseq
        %v553 = vshrl.u32 %v552, 7
        %v554 = vsub.s32 0, %v553
        %v555 = vrot.slane %v550, %v554
        %557 = vmatprep.subr.mxu0 0.0
        %558 = vmatpush1.msra.mxu0 %v534
        %559 = vmatprep.subr.mxu0 0.0
        %560 = vmatpush1.msra.mxu0 %v535
        %561 = vmatprep.subr.mxu0 0.0
        %562 = vmatpush1.msra.mxu0 %v536
        %563 = vmatprep.subr.mxu0 0.0
        %564 = vmatpush1.msra.mxu0 %v537
        %565 = vmatprep.subr.mxu0 0.0
        %566 = vmatpush1.msra.mxu0 %v538
        %567 = vmatprep.subr.mxu0 0.0
        %568 = vmatpush1.msra.mxu0 %v539
        %569 = vmatprep.subr.mxu0 0.0
        %570 = vmatpush1.msra.mxu0 %v540
        %571 = vmatprep.subr.mxu0 0.0
        %572 = vmatpush1.msra.mxu0 %v541
        %573 = vmatprep.subr.mxu0 0.0
        %574 = vmatpush1.msra.mxu0 %v542
        %575 = vmatprep.subr.mxu0 0.0
        %576 = vmatpush1.msra.mxu0 %v543
        %577 = vmatprep.subr.mxu0 0.0
        %578 = vmatpush1.msra.mxu0 %v544
        %579 = vmatprep.subr.mxu0 0.0
        %580 = vmatpush1.msra.mxu0 %v545
        %581 = vmatprep.subr.mxu0 0.0
        %582 = vmatpush1.msra.mxu0 %v546
        %583 = vmatprep.subr.mxu0 0.0
        %584 = vmatpush1.msra.mxu0 %v547
        %585 = vmatprep.subr.mxu0 0.0
        %586 = vmatpush1.msra.mxu0 %v548
        %587 = vmatprep.subr.mxu0 0.0
        %588 = vmatpush1.msra.mxu0 %v549
        %589 = vmatprep.subr.mxu0 0.0
        %590 = vmatpush1.msra.mxu0 0.0
        %591 = vmatprep.subr.mxu0 0.0
        %592 = vmatpush1.msra.mxu0 0.0
        %593 = vmatprep.subr.mxu0 0.0
        %594 = vmatpush1.msra.mxu0 0.0
        %595 = vmatprep.subr.mxu0 0.0
        %596 = vmatpush1.msra.mxu0 0.0
        %597 = vmatprep.subr.mxu0 0.0
        %598 = vmatpush1.msra.mxu0 0.0
        %599 = vmatprep.subr.mxu0 0.0
        %600 = vmatpush1.msra.mxu0 0.0
        %601 = vmatprep.subr.mxu0 0.0
        %602 = vmatpush1.msra.mxu0 0.0
        %603 = vmatprep.subr.mxu0 0.0
        %604 = vmatpush1.msra.mxu0 0.0
        %605 = vmatprep.subr.mxu0 0.0
        %606 = vmatpush1.msra.mxu0 0.0
        %607 = vmatprep.subr.mxu0 0.0
        %608 = vmatpush1.msra.mxu0 0.0
        %609 = vmatprep.subr.mxu0 0.0
        %610 = vmatpush1.msra.mxu0 0.0
        %611 = vmatprep.subr.mxu0 0.0
        %612 = vmatpush1.msra.mxu0 0.0
        %613 = vmatprep.subr.mxu0 0.0
        %614 = vmatpush1.msra.mxu0 0.0
        %615 = vmatprep.subr.mxu0 0.0
        %616 = vmatpush1.msra.mxu0 0.0
        %617 = vmatprep.subr.mxu0 0.0
        %618 = vmatpush1.msra.mxu0 0.0
        %619 = vmatprep.subr.mxu0 0.0
        %620 = vmatpush1.msra.mxu0 0.0
        %621 = vmatprep.mubr.f32.mxu0 0.0
        %622 = vmatmul.mubr.f32.gmra.mrb[0].mxu0 %v532
        %v623 = vpop.f32.mrb[0].mxu0
        %v624 = vadd.f32 %v555, %v623
        %v625 = vpop.f32.mrb[0].mxu0
        %626 = vmatprep.mubr.f32.mxu0 0.0
        %627 = vmatmul.mubr.f32.gmra.mrb[0].mxu0 %v533
        %v628 = vpop.f32.mrb[0].mxu0
        %v629 = vadd.f32 %v555, %v628
        %v630 = vpop.f32.mrb[0].mxu0
        %631 = vdwg.mxu0
        %v632 = vmax.f32 %v624, 0.0
        %v633 = vmax.f32 %v629, 0.0
        %v634 = vld [vmem:[%s7] sm:$0xff]
        %v635 = vld [vmem:[%s7 + $0x8] sm:$0xff]
        %v636 = vld [vmem:[%s7 + $0x10] sm:$0xff]
        %v637 = vld [vmem:[%s7 + $0x18] sm:$0xff]
        %v638 = vld [vmem:[%s7 + $0x20] sm:$0xff]
        %v639 = vld [vmem:[%s7 + $0x28] sm:$0xff]
        %v640 = vld [vmem:[%s7 + $0x30] sm:$0xff]
        %v641 = vld [vmem:[%s7 + $0x38] sm:$0xff]
        %v642 = vld [vmem:[%s7 + $0x40] sm:$0xff]
        %v643 = vld [vmem:[%s7 + $0x48] sm:$0xff]
        %v644 = vld [vmem:[%s7 + $0x50] sm:$0xff]
        %v645 = vld [vmem:[%s7 + $0x58] sm:$0xff]
        %v646 = vld [vmem:[%s7 + $0x60] sm:$0xff]
        %v647 = vld [vmem:[%s7 + $0x68] sm:$0xff]
        %v648 = vld [vmem:[%s7 + $0x70] sm:$0xff]
        %v649 = vld [vmem:[%s7 + $0x78] sm:$0xff]
        %v650 = vld [vmem:[%s8] sm:$0x1]
        %v652 = vlaneseq
        %v653 = vshrl.u32 %v652, 7
        %v654 = vsub.s32 0, %v653
        %v655 = vrot.slane %v650, %v654
        %657 = vmatprep.subr.mxu0 0.0
        %658 = vmatpush1.msra.mxu0 %v634
        %659 = vmatprep.subr.mxu0 0.0
        %660 = vmatpush1.msra.mxu0 %v635
        %661 = vmatprep.subr.mxu0 0.0
        %662 = vmatpush1.msra.mxu0 %v636
        %663 = vmatprep.subr.mxu0 0.0
        %664 = vmatpush1.msra.mxu0 %v637
        %665 = vmatprep.subr.mxu0 0.0
        %666 = vmatpush1.msra.mxu0 %v638
        %667 = vmatprep.subr.mxu0 0.0
        %668 = vmatpush1.msra.mxu0 %v639
        %669 = vmatprep.subr.mxu0 0.0
        %670 = vmatpush1.msra.mxu0 %v640
        %671 = vmatprep.subr.mxu0 0.0
        %672 = vmatpush1.msra.mxu0 %v641
        %673 = vmatprep.subr.mxu0 0.0
        %674 = vmatpush1.msra.mxu0 %v642
        %675 = vmatprep.subr.mxu0 0.0
        %676 = vmatpush1.msra.mxu0 %v643
        %677 = vmatprep.subr.mxu0 0.0
        %678 = vmatpush1.msra.mxu0 %v644
        %679 = vmatprep.subr.mxu0 0.0
        %680 = vmatpush1.msra.mxu0 %v645
        %681 = vmatprep.subr.mxu0 0.0
        %682 = vmatpush1.msra.mxu0 %v646
        %683 = vmatprep.subr.mxu0 0.0
        %684 = vmatpush1.msra.mxu0 %v647
        %685 = vmatprep.subr.mxu0 0.0
        %686 = vmatpush1.msra.mxu0 %v648
        %687 = vmatprep.subr.mxu0 0.0
        %688 = vmatpush1.msra.mxu0 %v649
        %689 = vmatprep.subr.mxu0 0.0
        %690 = vmatpush1.msra.mxu0 0.0
        %691 = vmatprep.subr.mxu0 0.0
        %692 = vmatpush1.msra.mxu0 0.0
        %693 = vmatprep.subr.mxu0 0.0
        %694 = vmatpush1.msra.mxu0 0.0
        %695 = vmatprep.subr.mxu0 0.0
        %696 = vmatpush1.msra.mxu0 0.0
        %697 = vmatprep.subr.mxu0 0.0
        %698 = vmatpush1.msra.mxu0 0.0
        %699 = vmatprep.subr.mxu0 0.0
        %700 = vmatpush1.msra.mxu0 0.0
        %701 = vmatprep.subr.mxu0 0.0
        %702 = vmatpush1.msra.mxu0 0.0
        %703 = vmatprep.subr.mxu0 0.0
        %704 = vmatpush1.msra.mxu0 0.0
        %705 = vmatprep.subr.mxu0 0.0
        %706 = vmatpush1.msra.mxu0 0.0
        %707 = vmatprep.subr.mxu0 0.0
        %708 = vmatpush1.msra.mxu0 0.0
        %709 = vmatprep.subr.mxu0 0.0
        %710 = vmatpush1.msra.mxu0 0.0
        %711 = vmatprep.subr.mxu0 0.0
        %712 = vmatpush1.msra.mxu0 0.0
        %713 = vmatprep.subr.mxu0 0.0
        %714 = vmatpush1.msra.mxu0 0.0
        %715 = vmatprep.subr.mxu0 0.0
        %716 = vmatpush1.msra.mxu0 0.0
        %717 = vmatprep.subr.mxu0 0.0
        %718 = vmatpush1.msra.mxu0 0.0
        %719 = vmatprep.subr.mxu0 0.0
        %720 = vmatpush1.msra.mxu0 0.0
        %721 = vmatprep.mubr.f32.mxu0 0.0
        %722 = vmatmul.mubr.f32.gmra.mrb[0].mxu0 %v632
        %v723 = vpop.f32.mrb[0].mxu0
        %v724 = vadd.f32 %v655, %v723
        %v725 = vpop.f32.mrb[0].mxu0
        %726 = vmatprep.mubr.f32.mxu0 0.0
        %727 = vmatmul.mubr.f32.gmra.mrb[0].mxu0 %v633
        %v728 = vpop.f32.mrb[0].mxu0
        %v729 = vadd.f32 %v655, %v728
        %v730 = vpop.f32.mrb[0].mxu0
        %731 = vdwg.mxu0
        %vm732 = vcmp.ge.f32.partialorder %v724, 0.0
        %vm733 = vcmp.ge.f32.partialorder %v729, 0.0
        %v734 = vstv %s415
        %v735 = vmul.f32 %v734, %v724
        %v736 = vmul.f32 %v734, %v729
        %v737 = vsel %vm732, %v724, %v735
        %v738 = vsel %vm733, %v729, %v736
        %v739 = vadd.f32 %v737, %v532
        %v740 = vadd.f32 %v738, %v533
        %741 = vst [vmem:[%s412] sm:$0xff] %v739
        %742 = vst [vmem:[%s412 + $0x8] sm:$0xff] %v740
        %s743 = smul.u32 2, %s26
        %p744 = scmp.lt.s32.totalorder %s25, 1
        %s745 = scalar_select %p744, %s25, 1
        %p746 = scmp.lt.s32.totalorder %s743, 1
        %s747 = scalar_select %p746, %s743, 1
        %s748 = smul.addr %s745, 2
        %s749 = sadd.s32 %s747, %s748
        %s750 = smul.addr %s749, 8
        %s751 = scalar_lea.vmem %s9, %s750
        // Predicated region
        $region61: #{dfsmn_layer_bn_pre.1} parent=55 // pred_check
          %p752 = pneg %p256
        $region62: #{dfsmn_layer_bn_pre.1} parent=55 // pred_check_branch
          %754 = sbr.rel (%p752) target = $region64
        $region63: #{dfsmn_layer_bn_pre.1} parent=55 // pred_region
          %s755 = smul.u32 2, %s26
        $region64: #{dfsmn_layer_bn_pre.1} parent=55 // pred_fallthru
          _
      $region56: #{dfsmn_layer_bn_pre.1} parent=5 // pred_fallthru
        _
      %p756 = scmp.le.s32.totalorder 2, %s16
      // Predicated region
      $region65: #{dfsmn_layer_bn_pre.1} parent=5 // pred_check
        %p757 = pneg %p756
      $region66: #{dfsmn_layer_bn_pre.1} parent=5 // pred_check_branch
        %759 = sbr.rel (%p757) target = $region68
      $region67: #{dfsmn_layer_bn_pre.1} parent=5 // pred_region
        %s760 = ssub.s32 %s16, 2
        // Predicated region
        $region69: #{dfsmn_layer_bn_pre.1} parent=67 // pred_check
          %p761 = pneg %p262
        $region70: #{dfsmn_layer_bn_pre.1} parent=67 // pred_check_branch
          %763 = sbr.rel (%p761) target = $region72
        $region71: #{dfsmn_layer_bn_pre.1} parent=67 // pred_region
          %s764 = smul.u32 2, %s28
          %p765 = scmp.lt.s32.totalorder %s27, 1
          %s766 = scalar_select %p765, %s27, 1
          %p767 = scmp.lt.s32.totalorder %s764, 1
          %s768 = scalar_select %p767, %s764, 1
          %s769 = smul.addr %s766, 2
          %s770 = sadd.s32 %s768, %s769
          %s771 = smul.addr %s770, 8
          %s772 = scalar_lea.vmem %s9, %s771
        $region72: #{dfsmn_layer_bn_pre.1} parent=67 // pred_fallthru
          _
      $region68: #{dfsmn_layer_bn_pre.1} parent=5 // pred_fallthru
        _
    $region6: #{dfsmn_layer_bn_pre.1} parent=1 // loop_footer
      %s20 = sadd.s32 1, %s16
    $region7: #{dfsmn_layer_bn_pre.1} parent=1 // loop_footer_branch
      %15 = sbr.rel target = $region3
    $region8: #{dfsmn_layer_bn_pre.1} parent=1 // loop_exit
      _
    %773 = vsyncpa [#allocation3], 1
    %s774 = scalar_lea.sflag [#allocation3], 1
    %775 = vsyncpa %s774, 1

</llo_original>
